<compile_context>
chip_gen: v7x
topology: tpu7x:2x2x1
jax: 0.10.0
libtpu: 0.0.40
codegen_flags: <defaults>
</compile_context>

<pallas_src>
import functools

import jax
import jax.numpy as jnp
from jax.experimental import pallas as pl
from jax.experimental.pallas import tpu as pltpu


def _round_up(x, m):
    return ((x + m - 1) // m) * m


def _ae_kernel(x_ref, w1t_ref, b1_ref, w2t_ref, b2_ref, enc_ref, dec_ref):
    # fc1 + ReLU: MXU matmul (f32 accumulate) + VPU bias/ReLU.
    h = jnp.dot(x_ref[...], w1t_ref[...], preferred_element_type=jnp.float32)
    h = jnp.maximum(h + b1_ref[...].astype(jnp.float32), 0.0)   # activation2 (ReLU)
    enc_ref[...] = h.astype(enc_ref.dtype)

    # fc4 (no activation on the decoder output, per AE.forward).
    d = jnp.dot(h, w2t_ref[...], preferred_element_type=jnp.float32)
    dec_ref[...] = (d + b2_ref[...].astype(jnp.float32)).astype(dec_ref.dtype)


def prepare_ae_params(w1, b1, w2, b2):
    """One-time layout plumbing, hoisted out of the hot path.

    w1: [hidden, nb_param], b1: [hidden], w2: [nb_param, hidden], b2: [nb_param]
    Returns (w1t [nb_param, hidden], b1 [1, hidden], w2t [hidden, nb_param], b2 [1, nb_param]).
    """
    w1t = jnp.asarray(jnp.transpose(w1))          # materialized once, reused every call
    w2t = jnp.asarray(jnp.transpose(w2))
    b1r = jnp.asarray(b1).reshape(1, -1)
    b2r = jnp.asarray(b2).reshape(1, -1)
    return w1t, b1r, w2t, b2r


@functools.partial(jax.jit, static_argnames=("batch_tile",))
def ae_forward(x, w1t, b1, w2t, b2, *, batch_tile=512):
    """x: [B, nb_param]; params as returned by prepare_ae_params.

    Returns (encoder_out [B, hidden], decoder_out [B, nb_param]) in x.dtype,
    matching AE.forward.
    """
    B, nb_param = x.shape
    hidden = w1t.shape[1]
    out_dtype = x.dtype
    itemsize = jnp.dtype(x.dtype).itemsize

    # ---- batch tiling ----
    # Keep at least 2 grid steps whenever B > 8 so the "parallel" batch axis
    # gives the second TensorCore (v7x) real work; 512 rows/tile is ~85% of
    # HBM roofline (raise to 1024 on v6e/v5e if VMEM headroom allows).
    bt = min(batch_tile, max(8, _round_up(pl.cdiv(B, 2), 8)))
    grid = (pl.cdiv(B, bt),)   # ragged last block handled by Pallas (masked writes)

    # ---- explicit VMEM budget (v5e scoped default is only 16 MiB) ----
    # double-buffered x/enc/dec slabs + (double-buffered) grid-invariant
    # weights & biases, plus headroom for internal scratch.
    tile_bytes = 2 * bt * (nb_param + hidden + nb_param) * itemsize
    weight_bytes = 2 * (2 * nb_param * hidden + hidden + nb_param) * itemsize
    vmem_limit = int(min(max(int(1.5 * (tile_bytes + weight_bytes)),
                             8 * 1024 * 1024),
                         64 * 1024 * 1024))

    enc, dec = pl.pallas_call(
        _ae_kernel,
        out_shape=(
            jax.ShapeDtypeStruct((B, hidden), out_dtype),    # encoder_out
            jax.ShapeDtypeStruct((B, nb_param), out_dtype),  # decoder_out
        ),
        grid_spec=pl.GridSpec(
            grid=grid,
            in_specs=[
                # x tile: batch-blocked, full feature extent (== array dim).
                pl.BlockSpec((bt, nb_param), lambda i: (i, 0)),
                # Grid-invariant operands (re-DMA skipped across steps).
                pl.BlockSpec((nb_param, hidden), lambda i: (0, 0)),   # W1^T
                pl.BlockSpec((1, hidden), lambda i: (0, 0)),          # b1
                pl.BlockSpec((hidden, nb_param), lambda i: (0, 0)),   # W2^T
                pl.BlockSpec((1, nb_param), lambda i: (0, 0)),        # b2
            ],
            out_specs=[
                pl.BlockSpec((bt, hidden), lambda i: (i, 0)),
                pl.BlockSpec((bt, nb_param), lambda i: (i, 0)),
            ],
        ),
        compiler_params=pltpu.CompilerParams(
            dimension_semantics=("parallel",),   # batch steps shard across TCs on v7x
            vmem_limit_bytes=vmem_limit,
        ),
    )(x, w1t, b1, w2t, b2)

    return enc, dec


def _ref_forward(x, w1, b1, w2, b2):
    h = jnp.maximum(x @ w1.T + b1, 0.0)
    d = h @ w2.T + b2
    return h, d


if __name__ == "__main__":
    # Small shapes consistent with the module: batch=8, nb_param=16, hidden=32.
    B, NB_PARAM, HIDDEN = 8, 16, 32

    key = jax.random.PRNGKey(0)
    kx, kw1, kb1, kw2, kb2 = jax.random.split(key, 5)

    x = jax.random.normal(kx, (B, NB_PARAM), dtype=jnp.float32)

    # Deterministic init mimicking nn.Linear's uniform(-1/sqrt(fan_in), +1/sqrt(fan_in)).
    bound1 = 1.0 / (NB_PARAM ** 0.5)
    w1 = jax.random.uniform(kw1, (HIDDEN, NB_PARAM), jnp.float32, -bound1, bound1)
    b1 = jax.random.uniform(kb1, (HIDDEN,), jnp.float32, -bound1, bound1)

    bound2 = 1.0 / (HIDDEN ** 0.5)
    w2 = jax.random.uniform(kw2, (NB_PARAM, HIDDEN), jnp.float32, -bound2, bound2)
    b2 = jax.random.uniform(kb2, (NB_PARAM,), jnp.float32, -bound2, bound2)

    # One-time param prep (transpose hoisted out of the jitted forward).
    params = prepare_ae_params(w1, b1, w2, b2)

    enc, dec = ae_forward(x, *params)
    jax.block_until_ready((enc, dec))

    enc_ref, dec_ref = _ref_forward(x, w1, b1, w2, b2)
    assert enc.shape == (B, HIDDEN) and dec.shape == (B, NB_PARAM)
    assert enc.dtype == x.dtype and dec.dtype == x.dtype
    assert jnp.allclose(enc, enc_ref, atol=1e-5, rtol=1e-5)
    assert jnp.allclose(dec, dec_ref, atol=1e-5, rtol=1e-5)

    # Ragged-batch case: B=13 does not divide the tile, exercising the
    # cdiv grid + masked batch-edge path (multiple grid steps, no padding).
    B2 = 13
    x2 = jax.random.normal(jax.random.PRNGKey(1), (B2, NB_PARAM), dtype=jnp.float32)
    enc2, dec2 = ae_forward(x2, *params)
    jax.block_until_ready((enc2, dec2))
    enc2_ref, dec2_ref = _ref_forward(x2, w1, b1, w2, b2)
    assert enc2.shape == (B2, HIDDEN) and dec2.shape == (B2, NB_PARAM)
    assert jnp.allclose(enc2, enc2_ref, atol=1e-5, rtol=1e-5)
    assert jnp.allclose(dec2, dec2_ref, atol=1e-5, rtol=1e-5)

    print("KERNEL_OK")
</pallas_src>

<mosaic_0001>
module attributes {stable_mosaic.version = 11 : i64} {
  func.func @_ae_kernel(%arg0: i32, %arg1: memref<8x16xf32, #tpu.memory_space<vmem>>, %arg2: memref<16x32xf32, #tpu.memory_space<vmem>>, %arg3: memref<1x32xf32, #tpu.memory_space<vmem>>, %arg4: memref<32x16xf32, #tpu.memory_space<vmem>>, %arg5: memref<1x16xf32, #tpu.memory_space<vmem>>, %arg6: memref<8x32xf32, #tpu.memory_space<vmem>>, %arg7: memref<8x16xf32, #tpu.memory_space<vmem>>) attributes {dimension_semantics = [#tpu.dimension_semantics<parallel>], iteration_bounds = array<i64: 1>, scalar_prefetch = 0 : i64, scratch_operands = 0 : i64, tpu.core_type = #tpu.core_type<tc>, window_params = [{transform_indices = @transform_0, window_bounds = array<i64: 8, 16>}, {pipeline_mode = #tpu.pipeline_mode<synchronous>, transform_indices = @transform_1, window_bounds = array<i64: 16, 32>}, {pipeline_mode = #tpu.pipeline_mode<synchronous>, transform_indices = @transform_2, window_bounds = array<i64: 1, 32>}, {pipeline_mode = #tpu.pipeline_mode<synchronous>, transform_indices = @transform_3, window_bounds = array<i64: 32, 16>}, {pipeline_mode = #tpu.pipeline_mode<synchronous>, transform_indices = @transform_4, window_bounds = array<i64: 1, 16>}, {transform_indices = @transform_5, window_bounds = array<i64: 8, 32>}, {transform_indices = @transform_6, window_bounds = array<i64: 8, 16>}]} {
    %c0 = arith.constant 0 : index
    %c0_0 = arith.constant 0 : index
    %0 = vector.load %arg1[%c0, %c0_0] : memref<8x16xf32, #tpu.memory_space<vmem>>, vector<8x16xf32>
    %c0_1 = arith.constant 0 : index
    %c0_2 = arith.constant 0 : index
    %1 = vector.load %arg2[%c0_1, %c0_2] : memref<16x32xf32, #tpu.memory_space<vmem>>, vector<16x32xf32>
    %cst = arith.constant dense<0.000000e+00> : vector<8x32xf32>
    %2 = tpu.matmul %0, %1, %cst {dimension_numbers = #tpu.dot_dimension_numbers<[1], [0], [0], [1], [0, 0, 1, 1], [], []>} : vector<8x16xf32>, vector<16x32xf32>, vector<8x32xf32> -> vector<8x32xf32>
    %c0_3 = arith.constant 0 : index
    %c0_4 = arith.constant 0 : index
    %3 = vector.load %arg3[%c0_3, %c0_4] : memref<1x32xf32, #tpu.memory_space<vmem>>, vector<1x32xf32>
    %4 = vector.broadcast %3 : vector<1x32xf32> to vector<8x32xf32>
    %5 = arith.addf %2, %4 : vector<8x32xf32>
    %cst_5 = arith.constant 0.000000e+00 : f32
    %6 = vector.broadcast %cst_5 : f32 to vector<8x32xf32>
    %7 = arith.maximumf %5, %6 : vector<8x32xf32>
    %c0_6 = arith.constant 0 : index
    %c0_7 = arith.constant 0 : index
    %8 = vector.load %arg6[%c0_6, %c0_7] : memref<8x32xf32, #tpu.memory_space<vmem>>, vector<8x32xf32>
    tpu.vector_store %arg6[%c0_6, %c0_7], %7 {strides = array<i32>} : memref<8x32xf32, #tpu.memory_space<vmem>>, vector<8x32xf32>,
    %c0_8 = arith.constant 0 : index
    %c0_9 = arith.constant 0 : index
    %9 = vector.load %arg4[%c0_8, %c0_9] : memref<32x16xf32, #tpu.memory_space<vmem>>, vector<32x16xf32>
    %cst_10 = arith.constant dense<0.000000e+00> : vector<8x16xf32>
    %10 = tpu.matmul %7, %9, %cst_10 {dimension_numbers = #tpu.dot_dimension_numbers<[1], [0], [0], [1], [0, 0, 1, 1], [], []>} : vector<8x32xf32>, vector<32x16xf32>, vector<8x16xf32> -> vector<8x16xf32>
    %c0_11 = arith.constant 0 : index
    %c0_12 = arith.constant 0 : index
    %11 = vector.load %arg5[%c0_11, %c0_12] : memref<1x16xf32, #tpu.memory_space<vmem>>, vector<1x16xf32>
    %12 = vector.broadcast %11 : vector<1x16xf32> to vector<8x16xf32>
    %13 = arith.addf %10, %12 : vector<8x16xf32>
    %c0_13 = arith.constant 0 : index
    %c0_14 = arith.constant 0 : index
    %14 = vector.load %arg7[%c0_13, %c0_14] : memref<8x16xf32, #tpu.memory_space<vmem>>, vector<8x16xf32>
    tpu.vector_store %arg7[%c0_13, %c0_14], %13 {strides = array<i32>} : memref<8x16xf32, #tpu.memory_space<vmem>>, vector<8x16xf32>,
    return
  }
  func.func @transform_0(%arg0: i32) -> (i32, i32) {
    %c0_i32 = arith.constant 0 : i32
    %c0_i32_0 = arith.constant 0 : i32
    return %arg0, %c0_i32 : i32, i32
  }
  func.func @transform_1(%arg0: i32) -> (i32, i32) {
    %c0_i32 = arith.constant 0 : i32
    %c0_i32_0 = arith.constant 0 : i32
    %c0_i32_1 = arith.constant 0 : i32
    return %c0_i32, %c0_i32_0 : i32, i32
  }
  func.func @transform_2(%arg0: i32) -> (i32, i32) {
    %c0_i32 = arith.constant 0 : i32
    %c0_i32_0 = arith.constant 0 : i32
    %c0_i32_1 = arith.constant 0 : i32
    return %c0_i32, %c0_i32_0 : i32, i32
  }
  func.func @transform_3(%arg0: i32) -> (i32, i32) {
    %c0_i32 = arith.constant 0 : i32
    %c0_i32_0 = arith.constant 0 : i32
    %c0_i32_1 = arith.constant 0 : i32
    return %c0_i32, %c0_i32_0 : i32, i32
  }
  func.func @transform_4(%arg0: i32) -> (i32, i32) {
    %c0_i32 = arith.constant 0 : i32
    %c0_i32_0 = arith.constant 0 : i32
    %c0_i32_1 = arith.constant 0 : i32
    return %c0_i32, %c0_i32_0 : i32, i32
  }
  func.func @transform_5(%arg0: i32) -> (i32, i32) {
    %c0_i32 = arith.constant 0 : i32
    %c0_i32_0 = arith.constant 0 : i32
    return %arg0, %c0_i32 : i32, i32
  }
  func.func @transform_6(%arg0: i32) -> (i32, i32) {
    %c0_i32 = arith.constant 0 : i32
    %c0_i32_0 = arith.constant 0 : i32
    return %arg0, %c0_i32 : i32, i32
  }
}

</mosaic_0001>

<llo_original>
// kernel: ae_forward.1
$region0: #{ae_forward.1}
  #allocation0 [shape = 'u32[]', space=smem, size = 0x4, offset = 0x4, fixed_abs, tag = 'smem constant byte address 0x4 - core index']
  #allocation1 [shape = 'u32[144,128]{1,0:T(1,128)}', space=vmem, size = 0x12000, scoped, tag = 'internal scratch']
  %s0 = inlined_call_operand.vmem [shape: f32[8,16], index: 0, kind: input, shape index: {}]
  %s1 = inlined_call_operand.vmem [shape: f32[16,32], index: 1, kind: input, shape index: {}]
  %s2 = inlined_call_operand.vmem [shape: f32[1,32], index: 2, kind: input, shape index: {}]
  %s3 = inlined_call_operand.vmem [shape: f32[32,16], index: 3, kind: input, shape index: {}]
  %s4 = inlined_call_operand.vmem [shape: f32[1,16], index: 4, kind: input, shape index: {}]
  %s5 = inlined_call_operand.hbm [shape: f32[8,32], index: 5, kind: output, shape index: {0}]
  %s6 = inlined_call_operand.hbm [shape: f32[8,16], index: 6, kind: output, shape index: {1}]
  %7 = xla_tuple %s5, %s6
  %s8 = sld [smem:[#allocation0]]
  $region38: #{ae_forward.1} parent=0
    _
  %s10 = ssub.s32 1, %s8
  %s11 = scalar_select 0, %s10, %s8
  $region1: #{ae_forward.1} parent=0
    #allocation2 [shape = 'u8[4096]{0}', space=vmem, size = 0x1000, scoped, tag = 'output window, operand 0, single buffered']
    #allocation3 [shape = 's32[1]{0}', space=sflag, size = 0x4, scoped, tag = 'scoped memory for ae_forward.1']
    #allocation4 [shape = 'u8[4096]{0}', space=vmem, size = 0x1000, scoped, tag = 'output window, operand 1, single buffered']
    #allocation5 [shape = 's32[1]{0}', space=sflag, size = 0x4, scoped, tag = 'scoped memory for ae_forward.1']
    %12 = vsyncpa [#allocation3], 0
    %13 = vsyncpa [#allocation5], 0
    // Predicated region
    $region2: #{ae_forward.1} parent=1 // pred_check
      _
    $region3: #{ae_forward.1} parent=1 // pred_check_branch
      %15 = sbr.rel (0) target = $region5
    $region4: #{ae_forward.1} parent=1 // pred_region
      _
    $region5: #{ae_forward.1} parent=1 // pred_fallthru
      _
    // Predicated region
    $region6: #{ae_forward.1} parent=1 // pred_check
      _
    $region7: #{ae_forward.1} parent=1 // pred_check_branch
      %17 = sbr.rel (0) target = $region9
    $region8: #{ae_forward.1} parent=1 // pred_region
      _
    $region9: #{ae_forward.1} parent=1 // pred_fallthru
      _
    // Predicated region
    $region10: #{ae_forward.1} parent=1 // pred_check
      _
    $region11: #{ae_forward.1} parent=1 // pred_check_branch
      %19 = sbr.rel (0) target = $region13
    $region12: #{ae_forward.1} parent=1 // pred_region
      _
    $region13: #{ae_forward.1} parent=1 // pred_fallthru
      _
    // Predicated region
    $region14: #{ae_forward.1} parent=1 // pred_check
      _
    $region15: #{ae_forward.1} parent=1 // pred_check_branch
      %21 = sbr.rel (0) target = $region17
    $region16: #{ae_forward.1} parent=1 // pred_region
      _
    $region17: #{ae_forward.1} parent=1 // pred_fallthru
      _
    // Predicated region
    $region18: #{ae_forward.1} parent=1 // pred_check
      _
    $region19: #{ae_forward.1} parent=1 // pred_check_branch
      %23 = sbr.rel (0) target = $region21
    $region20: #{ae_forward.1} parent=1 // pred_region
      _
    $region21: #{ae_forward.1} parent=1 // pred_fallthru
      _
    %v24 = vld [vmem:[%s0] sm:$0xff]
    %v25 = vld [vmem:[%s1] sm:$0xff]
    %v26 = vld [vmem:[%s1 + $0x8] sm:$0xff]
    %v27 = vld [vmem:[%s2] sm:$0x1]
    %v29 = vlaneseq
    %v30 = vshrl.u32 %v29, 7
    %v31 = vsub.s32 0, %v30
    %v32 = vrot.slane %v27, %v31
    %vm34 = vcmask 130048
    %v36 = vsel %vm34, %v24, 0
    %38 = vmatprep.subr.mxu0 0.0
    %39 = vmatpush1.msra.mxu0 %v25
    %40 = vmatprep.subr.mxu0 0.0
    %41 = vmatpush1.msra.mxu0 %v26
    %42 = vmatprep.subr.mxu0 0.0
    %43 = vmatpush1.msra.mxu0 0.0
    %44 = vmatprep.subr.mxu0 0.0
    %45 = vmatpush1.msra.mxu0 0.0
    %46 = vmatprep.subr.mxu0 0.0
    %47 = vmatpush1.msra.mxu0 0.0
    %48 = vmatprep.subr.mxu0 0.0
    %49 = vmatpush1.msra.mxu0 0.0
    %50 = vmatprep.subr.mxu0 0.0
    %51 = vmatpush1.msra.mxu0 0.0
    %52 = vmatprep.subr.mxu0 0.0
    %53 = vmatpush1.msra.mxu0 0.0
    %54 = vmatprep.subr.mxu0 0.0
    %55 = vmatpush1.msra.mxu0 0.0
    %56 = vmatprep.subr.mxu0 0.0
    %57 = vmatpush1.msra.mxu0 0.0
    %58 = vmatprep.subr.mxu0 0.0
    %59 = vmatpush1.msra.mxu0 0.0
    %60 = vmatprep.subr.mxu0 0.0
    %61 = vmatpush1.msra.mxu0 0.0
    %62 = vmatprep.subr.mxu0 0.0
    %63 = vmatpush1.msra.mxu0 0.0
    %64 = vmatprep.subr.mxu0 0.0
    %65 = vmatpush1.msra.mxu0 0.0
    %66 = vmatprep.subr.mxu0 0.0
    %67 = vmatpush1.msra.mxu0 0.0
    %68 = vmatprep.subr.mxu0 0.0
    %69 = vmatpush1.msra.mxu0 0.0
    %70 = vmatprep.subr.mxu0 0.0
    %71 = vmatpush1.msra.mxu0 0.0
    %72 = vmatprep.subr.mxu0 0.0
    %73 = vmatpush1.msra.mxu0 0.0
    %74 = vmatprep.subr.mxu0 0.0
    %75 = vmatpush1.msra.mxu0 0.0
    %76 = vmatprep.subr.mxu0 0.0
    %77 = vmatpush1.msra.mxu0 0.0
    %78 = vmatprep.subr.mxu0 0.0
    %79 = vmatpush1.msra.mxu0 0.0
    %80 = vmatprep.subr.mxu0 0.0
    %81 = vmatpush1.msra.mxu0 0.0
    %82 = vmatprep.subr.mxu0 0.0
    %83 = vmatpush1.msra.mxu0 0.0
    %84 = vmatprep.subr.mxu0 0.0
    %85 = vmatpush1.msra.mxu0 0.0
    %86 = vmatprep.subr.mxu0 0.0
    %87 = vmatpush1.msra.mxu0 0.0
    %88 = vmatprep.subr.mxu0 0.0
    %89 = vmatpush1.msra.mxu0 0.0
    %90 = vmatprep.subr.mxu0 0.0
    %91 = vmatpush1.msra.mxu0 0.0
    %92 = vmatprep.subr.mxu0 0.0
    %93 = vmatpush1.msra.mxu0 0.0
    %94 = vmatprep.subr.mxu0 0.0
    %95 = vmatpush1.msra.mxu0 0.0
    %96 = vmatprep.subr.mxu0 0.0
    %97 = vmatpush1.msra.mxu0 0.0
    %98 = vmatprep.subr.mxu0 0.0
    %99 = vmatpush1.msra.mxu0 0.0
    %100 = vmatprep.subr.mxu0 0.0
    %101 = vmatpush1.msra.mxu0 0.0
    %102 = vmatprep.mubr.f32.mxu0 0.0
    %103 = vmatmul.mubr.f32.gmra.mrb[0].mxu0 %v36
    %v104 = vpop.f32.mrb[0].mxu0
    %v105 = vadd.f32 %v32, %v104
    %v106 = vpop.f32.mrb[0].mxu0
    %107 = vdwg.mxu0
    %v108 = vmax.f32 %v105, 0.0
    %vm109 = vcmask 261120
    %110 = vst.msk [vmem:[#allocation2] sm:$0xff] %vm109, %v108
    %v111 = vld [vmem:[%s3] sm:$0xff]
    %v112 = vld [vmem:[%s3 + $0x8] sm:$0xff]
    %v113 = vld [vmem:[%s3 + $0x10] sm:$0xff]
    %v114 = vld [vmem:[%s3 + $0x18] sm:$0xff]
    %v115 = vld [vmem:[%s4] sm:$0x1]
    %v117 = vlaneseq
    %v118 = vshrl.u32 %v117, 7
    %v119 = vsub.s32 0, %v118
    %v120 = vrot.slane %v115, %v119
    %v123 = vsel %vm109, %v108, 0
    %125 = vmatprep.subr.mxu0 0.0
    %126 = vmatpush1.msra.mxu0 %v111
    %127 = vmatprep.subr.mxu0 0.0
    %128 = vmatpush1.msra.mxu0 %v112
    %129 = vmatprep.subr.mxu0 0.0
    %130 = vmatpush1.msra.mxu0 %v113
    %131 = vmatprep.subr.mxu0 0.0
    %132 = vmatpush1.msra.mxu0 %v114
    %133 = vmatprep.subr.mxu0 0.0
    %134 = vmatpush1.msra.mxu0 0.0
    %135 = vmatprep.subr.mxu0 0.0
    %136 = vmatpush1.msra.mxu0 0.0
    %137 = vmatprep.subr.mxu0 0.0
    %138 = vmatpush1.msra.mxu0 0.0
    %139 = vmatprep.subr.mxu0 0.0
    %140 = vmatpush1.msra.mxu0 0.0
    %141 = vmatprep.subr.mxu0 0.0
    %142 = vmatpush1.msra.mxu0 0.0
    %143 = vmatprep.subr.mxu0 0.0
    %144 = vmatpush1.msra.mxu0 0.0
    %145 = vmatprep.subr.mxu0 0.0
    %146 = vmatpush1.msra.mxu0 0.0
    %147 = vmatprep.subr.mxu0 0.0
    %148 = vmatpush1.msra.mxu0 0.0
    %149 = vmatprep.subr.mxu0 0.0
    %150 = vmatpush1.msra.mxu0 0.0
    %151 = vmatprep.subr.mxu0 0.0
    %152 = vmatpush1.msra.mxu0 0.0
    %153 = vmatprep.subr.mxu0 0.0
    %154 = vmatpush1.msra.mxu0 0.0
    %155 = vmatprep.subr.mxu0 0.0
    %156 = vmatpush1.msra.mxu0 0.0
    %157 = vmatprep.subr.mxu0 0.0
    %158 = vmatpush1.msra.mxu0 0.0
    %159 = vmatprep.subr.mxu0 0.0
    %160 = vmatpush1.msra.mxu0 0.0
    %161 = vmatprep.subr.mxu0 0.0
    %162 = vmatpush1.msra.mxu0 0.0
    %163 = vmatprep.subr.mxu0 0.0
    %164 = vmatpush1.msra.mxu0 0.0
    %165 = vmatprep.subr.mxu0 0.0
    %166 = vmatpush1.msra.mxu0 0.0
    %167 = vmatprep.subr.mxu0 0.0
    %168 = vmatpush1.msra.mxu0 0.0
    %169 = vmatprep.subr.mxu0 0.0
    %170 = vmatpush1.msra.mxu0 0.0
    %171 = vmatprep.subr.mxu0 0.0
    %172 = vmatpush1.msra.mxu0 0.0
    %173 = vmatprep.subr.mxu0 0.0
    %174 = vmatpush1.msra.mxu0 0.0
    %175 = vmatprep.subr.mxu0 0.0
    %176 = vmatpush1.msra.mxu0 0.0
    %177 = vmatprep.subr.mxu0 0.0
    %178 = vmatpush1.msra.mxu0 0.0
    %179 = vmatprep.subr.mxu0 0.0
    %180 = vmatpush1.msra.mxu0 0.0
    %181 = vmatprep.subr.mxu0 0.0
    %182 = vmatpush1.msra.mxu0 0.0
    %183 = vmatprep.subr.mxu0 0.0
    %184 = vmatpush1.msra.mxu0 0.0
    %185 = vmatprep.subr.mxu0 0.0
    %186 = vmatpush1.msra.mxu0 0.0
    %187 = vmatprep.subr.mxu0 0.0
    %188 = vmatpush1.msra.mxu0 0.0
    %189 = vmatprep.mubr.f32.mxu0 0.0
    %190 = vmatmul.mubr.f32.gmra.mrb[0].mxu0 %v123
    %v191 = vpop.f32.mrb[0].mxu0
    %v192 = vadd.f32 %v120, %v191
    %v193 = vpop.f32.mrb[0].mxu0
    %194 = vdwg.mxu0
    %195 = vst.msk [vmem:[#allocation4] sm:$0xff] %vm34, %v192
    // Predicated region
    $region22: #{ae_forward.1} parent=1 // pred_check
      _
    $region23: #{ae_forward.1} parent=1 // pred_check_branch
      %197 = sbr.rel (0) target = $region25
    $region24: #{ae_forward.1} parent=1 // pred_region
      %s199 = ssub.s32 128, 128
      %200 = vsyncadd [#allocation3], %s199
      %s202 = sshll.u32 [#allocation2], 4
      %s203 = int_to_ptr.vmem [resolvable:$true] %s202
      %205 = dma.vmem_to_hbm [thread:$0]  %s203, 128, %s5, [#allocation3]
    $region25: #{ae_forward.1} parent=1 // pred_fallthru
      _
    // Predicated region
    $region26: #{ae_forward.1} parent=1 // pred_check
      _
    $region27: #{ae_forward.1} parent=1 // pred_check_branch
      %207 = sbr.rel (0) target = $region29
    $region28: #{ae_forward.1} parent=1 // pred_region
      %s209 = ssub.s32 128, 128
      %210 = vsyncadd [#allocation5], %s209
      %s212 = sshll.u32 [#allocation4], 4
      %s213 = int_to_ptr.vmem [resolvable:$true] %s212
      %215 = dma.vmem_to_hbm [thread:$0]  %s213, 128, %s6, [#allocation5]
    $region29: #{ae_forward.1} parent=1 // pred_fallthru
      _
    // Predicated region
    $region30: #{ae_forward.1} parent=1 // pred_check
      _
    $region31: #{ae_forward.1} parent=1 // pred_check_branch
      %217 = sbr.rel (0) target = $region33
    $region32: #{ae_forward.1} parent=1 // pred_region
      %218 = dma.done [#allocation3], 128
    $region33: #{ae_forward.1} parent=1 // pred_fallthru
      _
    // Predicated region
    $region34: #{ae_forward.1} parent=1 // pred_check
      _
    $region35: #{ae_forward.1} parent=1 // pred_check_branch
      %220 = sbr.rel (0) target = $region37
    $region36: #{ae_forward.1} parent=1 // pred_region
      %221 = dma.done [#allocation5], 128
    $region37: #{ae_forward.1} parent=1 // pred_fallthru
      _
    %222 = vsyncpa [#allocation3], 1
    %223 = vsyncpa [#allocation5], 1

</llo_original>
